<compile_context>
chip_gen: v5e
topology: v5e:2x2
jax: 0.10.0
libtpu: 0.0.40
codegen_flags: <defaults>
</compile_context>

<pallas_src>
import functools

import jax
import jax.numpy as jnp
from jax.experimental import pallas as pl
from jax.experimental.pallas import tpu as pltpu

SCALES = (1, 4, 16)          # extractor.output_scales = [0, 2, 4] -> 2**s
FEAT_DIMS = (32, 128, 128)   # extractor.output_dim
STEM_DIM = 16
NUM_ITERS = 15               # optimizer.num_iters
LAMBDA = 0.01                # optimizer.lambda_
CONF_ROW = 128               # confidence channel lives in its own 128-lane group
FUSED_CH = 256               # fused (feat | conf) padded channel count


def _round_up(x, m):
    return (x + m - 1) // m * m


def _row_tiles(m):
    """(padded_rows, row_tile): multiple of 16 (bf16 pack), >=2 grid steps when possible."""
    if m <= 16:
        mp = _round_up(m, 16)
        return mp, mp
    tm = min(512, _round_up((m + 1) // 2, 16))
    mp = _round_up(m, tm)
    return mp, tm


# ----------------------------------------------------------------------------
# Pallas kernel 1: fused im2col-conv matmul.
#   bf16 x bf16 on the MXU, f32 accumulation; bias (+relu) fused.
#   fused=True: lanes [0:128) = feature channels, [128:256) = confidence channel.
#     sigmoid only on the conf lane group; per-pixel L2 norm on the feat lane group
#     (padded feat lanes are exact zeros), applied only to the first `norm_rows`
#     rows (= the target-image half of the batched tgt|ref matrix).
# ----------------------------------------------------------------------------
def _conv_kernel(a_ref, b_ref, bias_ref, o_ref, *, relu, fused, norm_rows):
    acc = jnp.dot(a_ref[...], b_ref[...], preferred_element_type=jnp.float32)
    acc = acc + bias_ref[...]
    if relu:
        acc = jnp.maximum(acc, 0.0)
    if fused:
        feat = acc[:, :CONF_ROW]
        conf = acc[:, CONF_ROW:]
        conf = 1.0 / (1.0 + jnp.exp(-conf))                       # EUP, half-tile only
        tm = feat.shape[0]
        row = pl.program_id(0) * tm + jax.lax.broadcasted_iota(jnp.int32, (tm, 1), 0)
        inv = jax.lax.rsqrt(jnp.sum(feat * feat, axis=-1, keepdims=True) + 1e-12)
        feat = jnp.where(row < norm_rows, feat * inv, feat)       # normalize tgt rows only
        acc = jnp.concatenate([feat, conf], axis=-1)
    o_ref[...] = acc.astype(o_ref.dtype)


def conv_matmul(a_bf16, b, bias, *, relu=False, fused=False, norm_rows=0):
    """a: (M, Kp) bf16 (K already padded), b: (Kp, Np), bias: (Np,) -> (Mp, Np) f32."""
    m, k = a_bf16.shape
    _, n = b.shape
    mp, tm = _row_tiles(m)
    a_p = jnp.pad(a_bf16, ((0, mp - m), (0, 0)))
    kernel = functools.partial(_conv_kernel, relu=relu, fused=fused, norm_rows=norm_rows)
    return pl.pallas_call(
        kernel,
        out_shape=jax.ShapeDtypeStruct((mp, n), jnp.float32),
        grid=(mp // tm,),
        in_specs=[pl.BlockSpec((tm, k), lambda i: (i, 0)),
                  pl.BlockSpec((k, n), lambda i: (0, 0)),
                  pl.BlockSpec((1, n), lambda i: (0, 0))],
        out_specs=pl.BlockSpec((tm, n), lambda i: (i, 0)),
        compiler_params=pltpu.CompilerParams(dimension_semantics=("parallel",)),
    )(a_p, b.astype(jnp.bfloat16), jnp.asarray(bias, jnp.float32).reshape(1, n))


# ----------------------------------------------------------------------------
# Pallas kernel 2: fused feature-metric LM pose optimizer (all 15 iterations per scale).
#   fmap_ref : (256, HWp) f32  fused tgt map, transposed & flattened (row 128 = sigmoid conf)
#   pts_ref  : (8, NP)    f32  rows: x, y, z, 1, mask*W_ref
#   fref_ref : (256, NP)  f32  L2-normalized gathered F_ref (rows >= D are zero)
#   pose_ref : (8, 128)   f32  [R | t] in rows 0..2
#   out_ref  : (8, 128)   f32  optimized [R | t] in rows 0..2
# ----------------------------------------------------------------------------
def _pose_opt_kernel(fmap_ref, pts_ref, fref_ref, pose_ref, out_ref, *,
                     feat_dim, map_w, map_h, fx, fy, cx, cy, size_x, size_y,
                     num_iters, lam):
    f32 = jnp.float32
    dp, hwp = fmap_ref.shape
    npts = pts_ref.shape[1]

    pts = pts_ref[...]                       # (8, npts)
    fref = fref_ref[...]                     # (dp, npts)
    wbase = pts[4:5, :]                      # mask * W_ref

    rr = jax.lax.broadcasted_iota(jnp.int32, (8, 8), 0)
    cc = jax.lax.broadcasted_iota(jnp.int32, (8, 8), 1)
    row8 = jax.lax.broadcasted_iota(jnp.int32, (8, 1), 0)
    col8 = jax.lax.broadcasted_iota(jnp.int32, (1, 8), 1)
    eye8 = (rr == cc).astype(f32)
    diag6 = ((rr == cc) & (rr < 6)).astype(f32)
    i3 = ((rr == cc) & (rr < 3)).astype(f32)
    row6 = (row8 == 6).astype(f32)
    row_lt3 = (row8 < 3).astype(f32)
    lane3 = (col8 == 3).astype(f32)
    # so(3) generators (skew(w) = wx*gen_x + wy*gen_y + wz*gen_z), padded to 8x8
    gen_x = ((rr == 2) & (cc == 1)).astype(f32) - ((rr == 1) & (cc == 2)).astype(f32)
    gen_y = ((rr == 0) & (cc == 2)).astype(f32) - ((rr == 2) & (cc == 0)).astype(f32)
    gen_z = ((rr == 1) & (cc == 0)).astype(f32) - ((rr == 0) & (cc == 1)).astype(f32)
    featmask = (jax.lax.broadcasted_iota(jnp.int32, (dp, 1), 0) < feat_dim).astype(f32)
    rowsel = [(row8 == k).astype(f32) for k in range(6)]

    def body(_, m2):                         # m2: (8,8), rows 0..2 = [R | t]
        pq = jnp.dot(m2, pts, preferred_element_type=f32)           # points in query frame
        xq = pq[0:1, :]
        yq = pq[1:2, :]
        zq = pq[2:3, :]
        zs = jnp.maximum(zq, 1e-3)
        u = xq / zs * fx + cx
        v = yq / zs * fy + cy
        vis = ((zq > 1e-3) & (u >= 0.0) & (u <= size_x - 1.0)
               & (v >= 0.0) & (v <= size_y - 1.0)).astype(f32)
        inview = ((u >= 0.0) & (u <= map_w - 1.0)
                  & (v >= 0.0) & (v <= map_h - 1.0)).astype(f32)
        x0 = jnp.floor(u)
        y0 = jnp.floor(v)
        wx1 = u - x0
        wx0 = 1.0 - wx1
        wy1 = v - y0
        wy0 = 1.0 - wy1
        ix0 = jnp.clip(x0, 0.0, map_w - 1.0)
        ix1 = jnp.clip(x0 + 1.0, 0.0, map_w - 1.0)
        iy0 = jnp.clip(y0, 0.0, map_h - 1.0)
        iy1 = jnp.clip(y0 + 1.0, 0.0, map_h - 1.0)
        idx = jnp.concatenate([iy0 * map_w + ix0, iy0 * map_w + ix1,
                               iy1 * map_w + ix0, iy1 * map_w + ix1],
                              axis=1).astype(jnp.int32)             # (1, 4*npts)
        lanes = jax.lax.broadcasted_iota(jnp.int32, (hwp, 4 * npts), 0)
        sel = (lanes == idx).astype(f32)                            # one-hot gather matrix
        g = jnp.dot(fmap_ref[...], sel, preferred_element_type=f32)  # (dp, 4*npts) MXU gather
        g00 = g[:, 0:npts]
        g10 = g[:, npts:2 * npts]
        g01 = g[:, 2 * npts:3 * npts]
        g11 = g[:, 3 * npts:4 * npts]
        val = (g00 * (wx0 * wy0) + g10 * (wx1 * wy0)
               + g01 * (wx0 * wy1) + g11 * (wx1 * wy1))             # bilinear value
        dvdx = (g10 - g00) * wy0 + (g11 - g01) * wy1                # analytic d/dx
        dvdy = (g01 - g00) * wx0 + (g11 - g10) * wx1                # analytic d/dy
        wq = val[CONF_ROW:CONF_ROW + 1, :]                          # (1, npts)
        fq = val * featmask
        dfdx = dvdx * featmask
        dfdy = dvdy * featmask
        r = fq - fref
        wpt = jnp.maximum(wbase * vis * inview * wq, 0.0)           # per-point weight

        sxx = jnp.sum(dfdx * dfdx, axis=0, keepdims=True)
        sxy = jnp.sum(dfdx * dfdy, axis=0, keepdims=True)
        syy = jnp.sum(dfdy * dfdy, axis=0, keepdims=True)
        gx = jnp.sum(dfdx * r, axis=0, keepdims=True)
        gy = jnp.sum(dfdy * r, axis=0, keepdims=True)

        a = fx / zs
        c = -fx * xq / (zs * zs)
        b = fy / zs
        d = -fy * yq / (zs * zs)
        # Jproj rows (projection o pose Jacobian), 6 pose params each, packed into (8, npts)
        jx = (rowsel[0] * a + rowsel[2] * c + rowsel[3] * (c * yq)
              + rowsel[4] * (a * zq - c * xq) + rowsel[5] * (-a * yq))
        jy = (rowsel[1] * b + rowsel[2] * d + rowsel[3] * (-b * zq + d * yq)
              + rowsel[4] * (-d * xq) + rowsel[5] * (b * xq))

        # Gram + gradient in ONE lane-contraction dot: gram[:, :6] = H, gram[:, 6] = g
        c1 = wpt * (sxx * jx + sxy * jy) + row6 * (wpt * gx)
        c2 = wpt * (sxy * jx + syy * jy) + row6 * (wpt * gy)
        ab = jnp.concatenate([jx, jy], axis=1)                      # (8, 2*npts)
        rhs = jnp.concatenate([c1, c2], axis=1)
        gram = jax.lax.dot_general(ab, rhs, (((1,), (1,)), ((), ())),
                                   preferred_element_type=f32)      # (8, 8)

        # TODO(synk): learned damping replaced by constant LM damping.
        haug = gram + lam * (gram * diag6) + 1e-3 * diag6
        # damped system is SPD -> Gauss-Jordan without pivoting, fully vectorized, 6 static steps
        for k in range(6):
            piv = haug[k:k + 1, k:k + 1]
            rowk = haug[k:k + 1, :]
            fac = haug[:, k:k + 1] / piv
            notk = (row8 != k).astype(f32)
            haug = haug - (fac * notk) * rowk
        diagv = jnp.sum(haug * eye8, axis=1, keepdims=True)
        diagv = jnp.where(row8 < 6, diagv, 1.0)
        delta = -haug[:, 6:7] / diagv                               # (8, 1)
        finite = (delta == delta) & (jnp.abs(delta) < 1e30)
        delta = jnp.where(finite, delta, 0.0)
        delta = jnp.clip(delta, -0.5, 0.5)

        # SE3 update: R <- dR R, t <- dR t + dt
        t_add = (delta * row_lt3) * lane3                           # dt into column 3
        wx_ = delta[3:4, 0:1]
        wy_ = delta[4:5, 0:1]
        wz_ = delta[5:6, 0:1]
        theta = jnp.sqrt(wx_ * wx_ + wy_ * wy_ + wz_ * wz_ + 1e-12)
        kmat = (wx_ * gen_x + wy_ * gen_y + wz_ * gen_z) / theta
        k2 = jnp.dot(kmat, kmat, preferred_element_type=f32)
        dr = i3 + jnp.sin(theta) * kmat + (1.0 - jnp.cos(theta)) * k2
        return jnp.dot(dr, m2, preferred_element_type=f32) + t_add

    m0 = pose_ref[...][:, 0:8]
    m_final = jax.lax.fori_loop(0, num_iters, body, m0)
    out_ref[...] = jnp.concatenate([m_final, jnp.zeros((8, 120), f32)], axis=1)


def run_pose_optimizer(fmap_rows, p3d, fref_n, wbase, cam, R0, t0, feat_dim, hs, ws):
    """fmap_rows: (HW, 256) fused normalized tgt map; returns optimized (R, t)."""
    n = p3d.shape[0]
    npad = max(8, _round_up(n, 8))
    hw = hs * ws
    hwp = _round_up(hw, 128)
    dp = fmap_rows.shape[1]
    fmap_t = jnp.pad(jnp.transpose(fmap_rows, (1, 0)), ((0, 0), (0, hwp - hw)))
    pts = jnp.zeros((8, npad), jnp.float32)
    pts = pts.at[0, :n].set(p3d[:, 0]).at[1, :n].set(p3d[:, 1]).at[2, :n].set(p3d[:, 2])
    pts = pts.at[3, :n].set(1.0).at[4, :n].set(wbase)
    fref_t = jnp.zeros((dp, npad), jnp.float32).at[:feat_dim, :n].set(fref_n.T)
    pose_in = jnp.zeros((8, 128), jnp.float32).at[:3, :3].set(R0).at[:3, 3].set(t0)
    kernel = functools.partial(
        _pose_opt_kernel, feat_dim=feat_dim, map_w=float(ws), map_h=float(hs),
        fx=cam.f[0], fy=cam.f[1], cx=cam.c[0], cy=cam.c[1],
        size_x=cam.size[0], size_y=cam.size[1], num_iters=NUM_ITERS, lam=LAMBDA)
    out = pl.pallas_call(
        kernel,
        out_shape=jax.ShapeDtypeStruct((8, 128), jnp.float32),
        grid=(1,),
        in_specs=[pl.BlockSpec((dp, hwp), lambda i: (0, 0)),
                  pl.BlockSpec((8, npad), lambda i: (0, 0)),
                  pl.BlockSpec((dp, npad), lambda i: (0, 0)),
                  pl.BlockSpec((8, 128), lambda i: (0, 0))],
        out_specs=pl.BlockSpec((8, 128), lambda i: (0, 0)),
        compiler_params=pltpu.CompilerParams(dimension_semantics=("arbitrary",)),
    )(fmap_t, pts, fref_t, pose_in)
    return out[:3, :3], out[:3, 3]


# ----------------------------------------------------------------------------
# Glue: im2col (bf16, K pre-padded), pooling, camera, bilinear sample for reference samples
# ----------------------------------------------------------------------------
def _im2col_bf16(x, kp):
    """3x3 same-padding im2col, emitted directly as bf16 with channel dim padded to kp."""
    h, w, c = x.shape
    xp = jnp.pad(x.astype(jnp.bfloat16), ((1, 1), (1, 1), (0, 0)))
    cols = [xp[di:di + h, dj:dj + w, :] for di in range(3) for dj in range(3)]
    if kp > 9 * c:
        cols.append(jnp.zeros((h, w, kp - 9 * c), jnp.bfloat16))
    return jnp.concatenate(cols, axis=-1).reshape(h * w, kp)


def _avg_pool(x, s):
    if s == 1:
        return x
    h, w, c = x.shape
    return x.reshape(h // s, s, w // s, s, c).mean(axis=(1, 3))


class Camera:
    def __init__(self, size, f, c):
        self.size, self.f, self.c = size, f, c      # tuples of Python floats (static)

    def scale(self, s):
        return Camera((self.size[0] * s, self.size[1] * s),
                      (self.f[0] * s, self.f[1] * s),
                      ((self.c[0] + 0.5) * s - 0.5, (self.c[1] + 0.5) * s - 0.5))

    def world2image(self, p3d):
        z = p3d[:, 2]
        zs = jnp.where(z > 1e-3, z, 1e-3)
        u = p3d[:, 0] / zs * self.f[0] + self.c[0]
        v = p3d[:, 1] / zs * self.f[1] + self.c[1]
        visible = ((z > 1e-3) & (u >= 0.0) & (u <= self.size[0] - 1.0)
                   & (v >= 0.0) & (v <= self.size[1] - 1.0))
        return jnp.stack([u, v], -1), visible


# TODO(synk): data-dependent bilinear gather of the 16 reference samples kept in XLA glue.
def _bilinear_sample(fmap, p2d):
    hm, wm, _ = fmap.shape
    x, y = p2d[:, 0], p2d[:, 1]
    x0 = jnp.floor(x)
    y0 = jnp.floor(y)
    wx1 = x - x0
    wx0 = 1.0 - wx1
    wy1 = y - y0
    wy0 = 1.0 - wy1
    ix0 = jnp.clip(x0, 0, wm - 1).astype(jnp.int32)
    ix1 = jnp.clip(x0 + 1.0, 0, wm - 1).astype(jnp.int32)
    iy0 = jnp.clip(y0, 0, hm - 1).astype(jnp.int32)
    iy1 = jnp.clip(y0 + 1.0, 0, hm - 1).astype(jnp.int32)
    in_view = (x >= 0.0) & (x <= wm - 1.0) & (y >= 0.0) & (y <= hm - 1.0)
    val = (fmap[iy0, ix0] * (wx0 * wy0)[:, None] + fmap[iy0, ix1] * (wx1 * wy0)[:, None]
           + fmap[iy1, ix0] * (wx0 * wy1)[:, None] + fmap[iy1, ix1] * (wx1 * wy1)[:, None])
    return val, in_view


# ----------------------------------------------------------------------------
# Extractor (synthetic stand-in for the VGG16-UNet, same multi-scale structure)
# ----------------------------------------------------------------------------
def init_params(key):
    keys = jax.random.split(key, 1 + 2 * len(SCALES))
    p = {'stem_w': 0.1 * jax.random.normal(keys[0], (3, 3, 3, STEM_DIM), jnp.float32),
         'stem_b': jnp.zeros((STEM_DIM,), jnp.float32)}
    for i, d in enumerate(FEAT_DIMS):
        p[f'feat_w_{i}'] = 0.1 * jax.random.normal(keys[1 + 2 * i], (3, 3, STEM_DIM, d), jnp.float32)
        p[f'feat_b_{i}'] = jnp.zeros((d,), jnp.float32)
        p[f'conf_w_{i}'] = 0.1 * jax.random.normal(keys[2 + 2 * i], (1, 1, STEM_DIM, 1), jnp.float32)
        p[f'conf_b_{i}'] = jnp.zeros((1,), jnp.float32)
    return p


def extract_features(params, tgt_hwc, ref_hwc):
    """Stem + per-scale (feat|conf) convs; tgt and ref batched into one matmul per conv."""
    h, w, _ = tgt_hwc.shape
    hw = h * w

    # stem conv, both images in one call (relu fused)
    cols = jnp.concatenate([_im2col_bf16(tgt_hwc, 128), _im2col_bf16(ref_hwc, 128)], axis=0)
    stem_w = jnp.pad(params['stem_w'].reshape(27, STEM_DIM), ((0, 101), (0, 128 - STEM_DIM)))
    stem_b = jnp.pad(params['stem_b'], (0, 128 - STEM_DIM))
    y = conv_matmul(cols, stem_w, stem_b, relu=True)
    stem_t = y[:hw, :STEM_DIM].reshape(h, w, STEM_DIM)
    stem_r = y[hw:2 * hw, :STEM_DIM].reshape(h, w, STEM_DIM)

    tgt_rows, ref_rows = [], []
    for i, (s, d) in enumerate(zip(SCALES, FEAT_DIMS)):
        hs, ws = h // s, w // s
        hws = hs * ws
        xt = _avg_pool(stem_t, s)
        xr = _avg_pool(stem_r, s)
        kdim = 9 * STEM_DIM
        kp = _round_up(kdim, 128)
        cols = jnp.concatenate([_im2col_bf16(xt, kp), _im2col_bf16(xr, kp)], axis=0)
        # feat conv + (1x1 conf conv expressed as center-tap of the shared 3x3 patch),
        # laid out as [feat (128 lanes) | conf (128 lanes)]
        b_feat = jnp.pad(params[f'feat_w_{i}'].reshape(kdim, d), ((0, kp - kdim), (0, 128 - d)))
        wc = params[f'conf_w_{i}'][0, 0, :, 0]
        b_conf = jnp.zeros((kp, 128), jnp.float32).at[4 * STEM_DIM:5 * STEM_DIM, 0].set(wc)
        bmat = jnp.concatenate([b_feat, b_conf], axis=1)
        bias = jnp.concatenate([jnp.pad(params[f'feat_b_{i}'], (0, 128 - d)),
                                jnp.pad(params[f'conf_b_{i}'], (0, 127))])
        out = conv_matmul(cols, bmat, bias, fused=True, norm_rows=hws)
        tgt_rows.append(out[:hws])          # tgt half: L2-normalized feats | sigmoid conf
        ref_rows.append(out[hws:2 * hws])   # ref half: unnormalized feats  | sigmoid conf
    return tgt_rows, ref_rows


# ----------------------------------------------------------------------------
# LearnPose.forward
# ----------------------------------------------------------------------------
def learn_pose_forward(params, data):
    _ = int(data['img.idx'])
    tgt = jnp.transpose(data['img.tgt_img'], (1, 2, 0)).astype(jnp.float32)   # CHW -> HWC
    ref = jnp.transpose(data['img.ref_imgs'], (1, 2, 0)).astype(jnp.float32)
    himg, wimg = tgt.shape[:2]

    tgt_rows, ref_rows = extract_features(params, tgt, ref)

    # TODO(synk): pinhole camera with fixed intrinsics replaces the COLMAP-parsed camera.
    camera = Camera(size=(float(wimg), float(himg)),
                    f=(1.2 * wimg, 1.2 * wimg),
                    c=((wimg - 1) / 2.0, (himg - 1) / 2.0))
    cam_pyr = [camera.scale(1.0 / s) for s in SCALES]

    # TODO(synk): returned tgt feature maps are already L2-normalized (fused into the conv
    #             epilogue); the optimizer math is identical to the original.
    pred_tgt = {'feature_maps': [], 'confidences': []}
    pred_ref = {'feature_maps': [], 'confidences': []}
    for i, (s, d) in enumerate(zip(SCALES, FEAT_DIMS)):
        hs, ws = himg // s, wimg // s
        pred_tgt['feature_maps'].append(tgt_rows[i][:, :d].reshape(hs, ws, d))
        pred_tgt['confidences'].append(tgt_rows[i][:, CONF_ROW:CONF_ROW + 1].reshape(hs, ws, 1))
        pred_ref['feature_maps'].append(ref_rows[i][:, :d].reshape(hs, ws, d))
        pred_ref['confidences'].append(ref_rows[i][:, CONF_ROW:CONF_ROW + 1].reshape(hs, ws, 1))

    p3d = data['img.points3D'].astype(jnp.float32)
    R = jnp.eye(3, dtype=jnp.float32)            # T_init = identity
    t = jnp.zeros((3,), jnp.float32)

    t_r2q_init, t_r2q_opt = [], []
    for i in reversed(range(len(SCALES))):       # coarse -> fine
        d = FEAT_DIMS[i]
        s = SCALES[i]
        hs, ws = himg // s, wimg // s
        cam = cam_pyr[i]

        # reference samples: one shared gather for F_ref and W_ref (glue, 16 points)
        ref_map = ref_rows[i].reshape(hs, ws, FUSED_CH)
        p2d_ref, visible = cam.world2image(p3d)
        samp, in_ref = _bilinear_sample(ref_map, p2d_ref)
        f_ref = samp[:, :d]
        w_ref = samp[:, CONF_ROW]
        mask = (visible & in_ref).astype(jnp.float32)
        nrm = jnp.sqrt(jnp.sum(f_ref * f_ref, axis=-1, keepdims=True))
        f_ref_n = f_ref / jnp.maximum(nrm, 1e-12)          # nnF.normalize(F_ref, dim=2)
        wbase = mask * w_ref

        t_r2q_init.append((R, t))
        R, t = run_pose_optimizer(tgt_rows[i], p3d, f_ref_n, wbase, cam, R, t, d, hs, ws)
        t_r2q_opt.append((R, t))

    return dict(ref=pred_ref, tgt=pred_tgt, T_r2q_init=t_r2q_init, T_r2q_opt=t_r2q_opt)


if __name__ == "__main__":
    key = jax.random.PRNGKey(0)
    k_img, k_ref, k_pts, k_par = jax.random.split(key, 4)

    HIMG = WIMG = 32
    NPTS = 16
    tgt_img = jax.random.uniform(k_img, (3, HIMG, WIMG), jnp.float32)
    ref_img = jax.random.uniform(k_ref, (3, HIMG, WIMG), jnp.float32)
    uvz = jax.random.uniform(k_pts, (NPTS, 3), jnp.float32)
    z = 2.0 + 2.0 * uvz[:, 2]
    x = (uvz[:, 0] * 2.0 - 1.0) * 0.15 * z
    y = (uvz[:, 1] * 2.0 - 1.0) * 0.15 * z
    p3d = jnp.stack([x, y, z], axis=-1)

    params = init_params(k_par)
    data = {'img.idx': 0, 'img.tgt_img': tgt_img, 'img.ref_imgs': ref_img, 'img.points3D': p3d}

    pred = learn_pose_forward(params, data)
    R_final, t_final = pred['T_r2q_opt'][-1]
    jax.block_until_ready((R_final, t_final, pred['tgt']['feature_maps'][0]))
    print("KERNEL_OK")
</pallas_src>

<mosaic_0001>
module attributes {stable_mosaic.version = 11 : i64} {
  func.func @_conv_kernel(%arg0: i32, %arg1: memref<512x128xbf16, #tpu.memory_space<vmem>>, %arg2: memref<128x128xbf16, #tpu.memory_space<vmem>>, %arg3: memref<1x128xf32, #tpu.memory_space<vmem>>, %arg4: memref<512x128xf32, #tpu.memory_space<vmem>>) attributes {dimension_semantics = [#tpu.dimension_semantics<parallel>], iteration_bounds = array<i64: 4>, scalar_prefetch = 0 : i64, scratch_operands = 0 : i64, tpu.core_type = #tpu.core_type<tc>, window_params = [{transform_indices = @transform_0, window_bounds = array<i64: 512, 128>}, {pipeline_mode = #tpu.pipeline_mode<synchronous>, transform_indices = @transform_1, window_bounds = array<i64: 128, 128>}, {pipeline_mode = #tpu.pipeline_mode<synchronous>, transform_indices = @transform_2, window_bounds = array<i64: 1, 128>}, {transform_indices = @transform_3, window_bounds = array<i64: 512, 128>}]} {
    %c0 = arith.constant 0 : index
    %c0_0 = arith.constant 0 : index
    %0 = vector.load %arg1[%c0, %c0_0] : memref<512x128xbf16, #tpu.memory_space<vmem>>, vector<512x128xbf16>
    %c0_1 = arith.constant 0 : index
    %c0_2 = arith.constant 0 : index
    %1 = vector.load %arg2[%c0_1, %c0_2] : memref<128x128xbf16, #tpu.memory_space<vmem>>, vector<128x128xbf16>
    %cst = arith.constant dense<0.000000e+00> : vector<512x128xf32>
    %2 = tpu.matmul %0, %1, %cst {dimension_numbers = #tpu.dot_dimension_numbers<[1], [0], [0], [1], [0, 0, 1, 1], [], []>} : vector<512x128xbf16>, vector<128x128xbf16>, vector<512x128xf32> -> vector<512x128xf32>
    %c0_3 = arith.constant 0 : index
    %c0_4 = arith.constant 0 : index
    %3 = vector.load %arg3[%c0_3, %c0_4] : memref<1x128xf32, #tpu.memory_space<vmem>>, vector<1x128xf32>
    %4 = vector.broadcast %3 : vector<1x128xf32> to vector<512x128xf32>
    %5 = arith.addf %2, %4 : vector<512x128xf32>
    %cst_5 = arith.constant 0.000000e+00 : f32
    %6 = vector.broadcast %cst_5 : f32 to vector<512x128xf32>
    %7 = arith.maximumf %5, %6 : vector<512x128xf32>
    %c0_6 = arith.constant 0 : index
    %c0_7 = arith.constant 0 : index
    %8 = vector.load %arg4[%c0_6, %c0_7] : memref<512x128xf32, #tpu.memory_space<vmem>>, vector<512x128xf32>
    tpu.vector_store %arg4[%c0_6, %c0_7], %7 {strides = array<i32>} : memref<512x128xf32, #tpu.memory_space<vmem>>, vector<512x128xf32>,
    return
  }
  func.func @transform_0(%arg0: i32) -> (i32, i32) {
    %c0_i32 = arith.constant 0 : i32
    %c0_i32_0 = arith.constant 0 : i32
    return %arg0, %c0_i32 : i32, i32
  }
  func.func @transform_1(%arg0: i32) -> (i32, i32) {
    %c0_i32 = arith.constant 0 : i32
    %c0_i32_0 = arith.constant 0 : i32
    %c0_i32_1 = arith.constant 0 : i32
    return %c0_i32, %c0_i32_0 : i32, i32
  }
  func.func @transform_2(%arg0: i32) -> (i32, i32) {
    %c0_i32 = arith.constant 0 : i32
    %c0_i32_0 = arith.constant 0 : i32
    %c0_i32_1 = arith.constant 0 : i32
    return %c0_i32, %c0_i32_0 : i32, i32
  }
  func.func @transform_3(%arg0: i32) -> (i32, i32) {
    %c0_i32 = arith.constant 0 : i32
    %c0_i32_0 = arith.constant 0 : i32
    return %arg0, %c0_i32 : i32, i32
  }
}

</mosaic_0001>

<llo_original>
// kernel: tpu_custom_call.1
$region0: #{tpu_custom_call.1}
  #allocation0 [shape = 'u32[]', space=smem, size = 0x4, offset = 0x4, fixed_abs, tag = 'smem constant byte address 0x4 - core index']
  #allocation1 [shape = 'u32[72,128]{1,0:T(1,128)}', space=vmem, size = 0x9000, scoped, tag = 'internal scratch']
  %s0 = inlined_call_operand.hbm [shape: bf16[2048,128], index: 0, kind: input, shape index: {}]
  %s1 = inlined_call_operand.hbm [shape: bf16[128,128], index: 1, kind: input, shape index: {}]
  %s2 = inlined_call_operand.vmem [shape: f32[1,128], index: 2, kind: input, shape index: {}]
  %s3 = inlined_call_operand.hbm [shape: f32[2048,128], index: 3, kind: output, shape index: {}]
  %s4 = sld [smem:[#allocation0]]
  $region53: #{tpu_custom_call.1} parent=0
    _
  %s6 = ssub.s32 1, %s4
  %s7 = scalar_select 0, %s6, %s4
  $region1: #{tpu_custom_call.1} parent=0
    #allocation2 [shape = 'u8[262144]{0}', space=vmem, size = 0x40000, scoped, tag = 'input window, operand 0']
    #allocation3 [shape = 's32[2]{0}', space=sflag, size = 0x8, scoped, tag = 'scoped memory for tpu_custom_call.1']
    #allocation4 [shape = 's32[2]{0}', space=sflag, size = 0x8, scoped, tag = 'scoped memory for tpu_custom_call.1']
    #allocation5 [shape = 'u8[32768]{0}', space=vmem, size = 0x8000, scoped, tag = 'input window, operand 1, single buffered']
    #allocation6 [shape = 's32[1]{0}', space=sflag, size = 0x4, scoped, tag = 'scoped memory for tpu_custom_call.1']
    #allocation7 [shape = 'u8[524288]{0}', space=vmem, size = 0x80000, scoped, tag = 'output window, operand 0']
    %8 = vsyncpa [#allocation3], 0
    %s9 = scalar_lea.sflag [#allocation3], 1
    %10 = vsyncpa %s9, 0
    %11 = vsyncpa [#allocation6], 0
    %12 = vsyncpa [#allocation4], 0
    %s13 = scalar_lea.sflag [#allocation4], 1
    %14 = vsyncpa %s13, 0
    loop: start=0, step=1, limit=6
    $region2: #{tpu_custom_call.1} parent=1 // loop_pre_header
      _
    $region3: #{tpu_custom_call.1} parent=1 // loop_header
      %s16 = sphi 0, %s20
      %p17 = scmp.ge.s32.totalorder %s16, 6
      %s26 = sphi 0, %s28
      %s29 = sphi 0, %s26
      %s30 = sphi 0, %s29
      %s46 = sphi 0, %s30
      %s50 = sphi 0, %s50
      %s52 = sphi 0, %s50
      %s53 = sphi 0, %s52
      %s67 = sphi 0, %s53
      %s71 = sphi 0, %s71
      %s73 = sphi 0, %s71
      %s74 = sphi 0, %s73
      %s88 = sphi 0, %s74
      %s94 = sphi 0, %s96
      %s97 = sphi 0, %s94
      %s98 = sphi 0, %s97
      %s114 = sphi 0, %s98
    $region4: #{tpu_custom_call.1} parent=1 // loop_header_branch
      %19 = sbr.rel (%p17) target = $region8
    $region5: #{tpu_custom_call.1} parent=1 // loop_body
      %s21 = ssub.s32 %s16, 1
      %s22 = ssub.s32 %s16, 2
      %s23 = sadd.s32 %s16, 1
      %s24 = ssub.s32 %s16, %s23
      %p25 = scmp.eq.s32.totalorder %s24, 0
      %s27 = sadd.s32 %s26, 1
      %s28 = scalar_select %p25, %s26, %s27
      %p31 = pneg %p25
      %p32 = scmp.eq.s32.totalorder %s16, 3
      %p33 = por %p31, %p32
      %p34 = scmp.ne.s32.totalorder %s26, %s29
      %p35 = scmp.eq.s32.totalorder %s16, 0
      %p36 = por %p34, %p35
      %p37 = scmp.ne.s32.totalorder %s26, %s29
      %p38 = scmp.eq.s32.totalorder %s21, 3
      %p39 = por %p37, %p38
      %p40 = scmp.ne.s32.totalorder %s29, %s30
      %p41 = scmp.eq.s32.totalorder %s21, 0
      %p42 = por %p40, %p41
      %p43 = scmp.ne.s32.totalorder %s29, %s30
      %p44 = scmp.eq.s32.totalorder %s22, 3
      %p45 = por %p43, %p44
      %p47 = scmp.ne.s32.totalorder %s30, %s46
      %p48 = scmp.eq.s32.totalorder %s22, 0
      %p49 = por %p47, %p48
      %s51 = sadd.s32 %s50, 1
      %p54 = scmp.eq.s32.totalorder %s16, 3
      %p55 = scmp.ne.s32.totalorder %s50, %s52
      %p56 = scmp.eq.s32.totalorder %s16, 0
      %p57 = por %p55, %p56
      %p58 = scmp.ne.s32.totalorder %s50, %s52
      %p59 = scmp.eq.s32.totalorder %s21, 3
      %p60 = por %p58, %p59
      %p61 = scmp.ne.s32.totalorder %s52, %s53
      %p62 = scmp.eq.s32.totalorder %s21, 0
      %p63 = por %p61, %p62
      %p64 = scmp.ne.s32.totalorder %s52, %s53
      %p65 = scmp.eq.s32.totalorder %s22, 3
      %p66 = por %p64, %p65
      %p68 = scmp.ne.s32.totalorder %s53, %s67
      %p69 = scmp.eq.s32.totalorder %s22, 0
      %p70 = por %p68, %p69
      %s72 = sadd.s32 %s71, 1
      %p75 = scmp.eq.s32.totalorder %s16, 3
      %p76 = scmp.ne.s32.totalorder %s71, %s73
      %p77 = scmp.eq.s32.totalorder %s16, 0
      %p78 = por %p76, %p77
      %p79 = scmp.ne.s32.totalorder %s71, %s73
      %p80 = scmp.eq.s32.totalorder %s21, 3
      %p81 = por %p79, %p80
      %p82 = scmp.ne.s32.totalorder %s73, %s74
      %p83 = scmp.eq.s32.totalorder %s21, 0
      %p84 = por %p82, %p83
      %p85 = scmp.ne.s32.totalorder %s73, %s74
      %p86 = scmp.eq.s32.totalorder %s22, 3
      %p87 = por %p85, %p86
      %p89 = scmp.ne.s32.totalorder %s74, %s88
      %p90 = scmp.eq.s32.totalorder %s22, 0
      %p91 = por %p89, %p90
      %s92 = ssub.s32 %s16, %s23
      %p93 = scmp.eq.s32.totalorder %s92, 0
      %s95 = sadd.s32 %s94, 1
      %s96 = scalar_select %p93, %s94, %s95
      %p99 = pneg %p93
      %p100 = scmp.eq.s32.totalorder %s16, 3
      %p101 = por %p99, %p100
      %p102 = scmp.ne.s32.totalorder %s94, %s97
      %p103 = scmp.eq.s32.totalorder %s16, 0
      %p104 = por %p102, %p103
      %p105 = scmp.ne.s32.totalorder %s94, %s97
      %p106 = scmp.eq.s32.totalorder %s21, 3
      %p107 = por %p105, %p106
      %p108 = scmp.ne.s32.totalorder %s97, %s98
      %p109 = scmp.eq.s32.totalorder %s21, 0
      %p110 = por %p108, %p109
      %p111 = scmp.ne.s32.totalorder %s97, %s98
      %p112 = scmp.eq.s32.totalorder %s22, 3
      %p113 = por %p111, %p112
      %p115 = scmp.ne.s32.totalorder %s98, %s114
      %p116 = scmp.eq.s32.totalorder %s22, 0
      %p117 = por %p115, %p116
      %p118 = scmp.le.s32.totalorder 1, %s16
      %p119 = scmp.lt.s32.totalorder %s16, 5
      %p120 = pnand %p118, %p119
      %p121 = pneg %p120
      // Predicated region
      $region9: #{tpu_custom_call.1} parent=5 // pred_check
        _
      $region10: #{tpu_custom_call.1} parent=5 // pred_check_branch
        %123 = sbr.rel (%p120) target = $region12
      $region11: #{tpu_custom_call.1} parent=5 // pred_region
        %s124 = ssub.s32 %s16, 1
        // Predicated region
        $region13: #{tpu_custom_call.1} parent=11 // pred_check
          %p125 = pneg %p63
        $region14: #{tpu_custom_call.1} parent=11 // pred_check_branch
          %127 = sbr.rel (%p125) target = $region16
        $region15: #{tpu_custom_call.1} parent=11 // pred_region
          %129 = vsyncadd [#allocation6], 0
          %s130 = sshll.u32 %s1, 4
          %s131 = int_to_ptr.hbm [resolvable:$true] %s130
          %s132 = sshll.u32 [#allocation5], 4
          %s133 = int_to_ptr.vmem [resolvable:$true] %s132
          %138 = dma.hbm_to_vmem [thread:$0]  %s131, 1024, %s133, [#allocation6], 64, 64, 4
        $region16: #{tpu_custom_call.1} parent=11 // pred_fallthru
          _
        // Predicated region
        $region17: #{tpu_custom_call.1} parent=11 // pred_check
          %p139 = pneg %p84
        $region18: #{tpu_custom_call.1} parent=11 // pred_check_branch
          %141 = sbr.rel (%p139) target = $region20
        $region19: #{tpu_custom_call.1} parent=11 // pred_region
          _
        $region20: #{tpu_custom_call.1} parent=11 // pred_fallthru
          _
      $region12: #{tpu_custom_call.1} parent=5 // pred_fallthru
        _
      %p142 = scmp.lt.s32.totalorder %s16, 4
      // Predicated region
      $region21: #{tpu_custom_call.1} parent=5 // pred_check
        %p143 = pneg %p142
      $region22: #{tpu_custom_call.1} parent=5 // pred_check_branch
        %145 = sbr.rel (%p143) target = $region24
      $region23: #{tpu_custom_call.1} parent=5 // pred_region
        // Predicated region
        $region25: #{tpu_custom_call.1} parent=23 // pred_check
          %p146 = pneg %p36
        $region26: #{tpu_custom_call.1} parent=23 // pred_check_branch
          %148 = sbr.rel (%p146) target = $region28
        $region27: #{tpu_custom_call.1} parent=23 // pred_region
          %s149 = sand.u32 %s26, 1
          %s150 = scalar_lea.sflag [#allocation3], %s149
          %s151 = sand.u32 %s26, 1
          %s152 = smul.addr %s151, 256
          %s153 = scalar_lea.vmem [#allocation2], %s152
          %s154 = smul.u32 64, %s16
          %156 = vsyncadd %s150, 0
          %s157 = smul.addr %s154, 4
          %s158 = scalar_lea.hbm %s0, %s157
          %s159 = sshll.u32 %s158, 4
          %s160 = int_to_ptr.hbm [resolvable:$true] %s159
          %s161 = sshll.u32 %s153, 4
          %s162 = int_to_ptr.vmem [resolvable:$true] %s161
          %167 = dma.hbm_to_vmem [thread:$0]  %s160, 4096, %s162, %s150, 64, 64, 4
        $region28: #{tpu_custom_call.1} parent=23 // pred_fallthru
          _
      $region24: #{tpu_custom_call.1} parent=5 // pred_fallthru
        _
      %p168 = scmp.le.s32.totalorder 1, %s16
      %p169 = scmp.lt.s32.totalorder %s16, 5
      %p170 = pnand %p168, %p169
      %p171 = pneg %p170
      // Predicated region
      $region29: #{tpu_custom_call.1} parent=5 // pred_check
        _
      $region30: #{tpu_custom_call.1} parent=5 // pred_check_branch
        %173 = sbr.rel (%p170) target = $region32
      $region31: #{tpu_custom_call.1} parent=5 // pred_region
        %s174 = ssub.s32 %s16, 1
        %s175 = sand.u32 %s29, 1
        %s176 = scalar_lea.sflag [#allocation3], %s175
        %s177 = sand.u32 %s29, 1
        %s178 = smul.addr %s177, 256
        %s179 = scalar_lea.vmem [#allocation2], %s178
        // Predicated region
        $region33: #{tpu_custom_call.1} parent=31 // pred_check
          %p180 = pneg %p42
        $region34: #{tpu_custom_call.1} parent=31 // pred_check_branch
          %182 = sbr.rel (%p180) target = $region36
        $region35: #{tpu_custom_call.1} parent=31 // pred_region
          %184 = dma.done %s176, 4096
        $region36: #{tpu_custom_call.1} parent=31 // pred_fallthru
          _
        // Predicated region
        $region37: #{tpu_custom_call.1} parent=31 // pred_check
          %p185 = pneg %p63
        $region38: #{tpu_custom_call.1} parent=31 // pred_check_branch
          %187 = sbr.rel (%p185) target = $region40
        $region39: #{tpu_custom_call.1} parent=31 // pred_region
          %189 = dma.done [#allocation6], 1024
        $region40: #{tpu_custom_call.1} parent=31 // pred_fallthru
          _
        %s190 = sand.u32 %s29, 1
        %s191 = scalar_lea.sflag [#allocation3], %s190
        %s192 = sand.u32 %s29, 1
        %s193 = smul.addr %s192, 256
        %s194 = scalar_lea.vmem [#allocation2], %s193
        %p195 = pneg %p42
        %p196 = pneg %p39
        %p197 = pneg %p63
        %p198 = pneg %p60
        %p199 = pneg %p84
        %p200 = pneg %p81
        %p201 = pneg %p110
        %p202 = pneg %p107
        %s203 = sand.u32 %s97, 1
        %s204 = scalar_lea.sflag [#allocation4], %s203
        %s205 = sand.u32 %s97, 1
        %s206 = smul.addr %s205, 512
        %s207 = scalar_lea.vmem [#allocation7], %s206
        %s208 = smul.u32 64, %s21
        %s209 = smul.u32 64, %s21
        %v210 = vld [vmem:[%s179] sm:$0xf]
        %v211 = vld [vmem:[%s179 + $0x4] sm:$0xf]
        %v212 = vld [vmem:[%s179 + $0x8] sm:$0xf]
        %v213 = vld [vmem:[%s179 + $0xc] sm:$0xf]
        %v214 = vld [vmem:[%s179 + $0x10] sm:$0xf]
        %v215 = vld [vmem:[%s179 + $0x14] sm:$0xf]
        %v216 = vld [vmem:[%s179 + $0x18] sm:$0xf]
        %v217 = vld [vmem:[%s179 + $0x1c] sm:$0xf]
        %v218 = vld [vmem:[%s179 + $0x20] sm:$0xf]
        %v219 = vld [vmem:[%s179 + $0x24] sm:$0xf]
        %v220 = vld [vmem:[%s179 + $0x28] sm:$0xf]
        %v221 = vld [vmem:[%s179 + $0x2c] sm:$0xf]
        %v222 = vld [vmem:[%s179 + $0x30] sm:$0xf]
        %v223 = vld [vmem:[%s179 + $0x34] sm:$0xf]
        %v224 = vld [vmem:[%s179 + $0x38] sm:$0xf]
        %v225 = vld [vmem:[%s179 + $0x3c] sm:$0xf]
        %v226 = vld [vmem:[%s179 + $0x40] sm:$0xf]
        %v227 = vld [vmem:[%s179 + $0x44] sm:$0xf]
        %v228 = vld [vmem:[%s179 + $0x48] sm:$0xf]
        %v229 = vld [vmem:[%s179 + $0x4c] sm:$0xf]
        %v230 = vld [vmem:[%s179 + $0x50] sm:$0xf]
        %v231 = vld [vmem:[%s179 + $0x54] sm:$0xf]
        %v232 = vld [vmem:[%s179 + $0x58] sm:$0xf]
        %v233 = vld [vmem:[%s179 + $0x5c] sm:$0xf]
        %v234 = vld [vmem:[%s179 + $0x60] sm:$0xf]
        %v235 = vld [vmem:[%s179 + $0x64] sm:$0xf]
        %v236 = vld [vmem:[%s179 + $0x68] sm:$0xf]
        %v237 = vld [vmem:[%s179 + $0x6c] sm:$0xf]
        %v238 = vld [vmem:[%s179 + $0x70] sm:$0xf]
        %v239 = vld [vmem:[%s179 + $0x74] sm:$0xf]
        %v240 = vld [vmem:[%s179 + $0x78] sm:$0xf]
        %v241 = vld [vmem:[%s179 + $0x7c] sm:$0xf]
        %v242 = vld [vmem:[%s179 + $0x80] sm:$0xf]
        %v243 = vld [vmem:[%s179 + $0x84] sm:$0xf]
        %v244 = vld [vmem:[%s179 + $0x88] sm:$0xf]
        %v245 = vld [vmem:[%s179 + $0x8c] sm:$0xf]
        %v246 = vld [vmem:[%s179 + $0x90] sm:$0xf]
        %v247 = vld [vmem:[%s179 + $0x94] sm:$0xf]
        %v248 = vld [vmem:[%s179 + $0x98] sm:$0xf]
        %v249 = vld [vmem:[%s179 + $0x9c] sm:$0xf]
        %v250 = vld [vmem:[%s179 + $0xa0] sm:$0xf]
        %v251 = vld [vmem:[%s179 + $0xa4] sm:$0xf]
        %v252 = vld [vmem:[%s179 + $0xa8] sm:$0xf]
        %v253 = vld [vmem:[%s179 + $0xac] sm:$0xf]
        %v254 = vld [vmem:[%s179 + $0xb0] sm:$0xf]
        %v255 = vld [vmem:[%s179 + $0xb4] sm:$0xf]
        %v256 = vld [vmem:[%s179 + $0xb8] sm:$0xf]
        %v257 = vld [vmem:[%s179 + $0xbc] sm:$0xf]
        %v258 = vld [vmem:[%s179 + $0xc0] sm:$0xf]
        %v259 = vld [vmem:[%s179 + $0xc4] sm:$0xf]
        %v260 = vld [vmem:[%s179 + $0xc8] sm:$0xf]
        %v261 = vld [vmem:[%s179 + $0xcc] sm:$0xf]
        %v262 = vld [vmem:[%s179 + $0xd0] sm:$0xf]
        %v263 = vld [vmem:[%s179 + $0xd4] sm:$0xf]
        %v264 = vld [vmem:[%s179 + $0xd8] sm:$0xf]
        %v265 = vld [vmem:[%s179 + $0xdc] sm:$0xf]
        %v266 = vld [vmem:[%s179 + $0xe0] sm:$0xf]
        %v267 = vld [vmem:[%s179 + $0xe4] sm:$0xf]
        %v268 = vld [vmem:[%s179 + $0xe8] sm:$0xf]
        %v269 = vld [vmem:[%s179 + $0xec] sm:$0xf]
        %v270 = vld [vmem:[%s179 + $0xf0] sm:$0xf]
        %v271 = vld [vmem:[%s179 + $0xf4] sm:$0xf]
        %v272 = vld [vmem:[%s179 + $0xf8] sm:$0xf]
        %v273 = vld [vmem:[%s179 + $0xfc] sm:$0xf]
        %v274 = vld [vmem:[#allocation5] sm:$0xf]
        %v275 = vld [vmem:[#allocation5 + $0x4] sm:$0xf]
        %v276 = vld [vmem:[#allocation5 + $0x8] sm:$0xf]
        %v277 = vld [vmem:[#allocation5 + $0xc] sm:$0xf]
        %v278 = vld [vmem:[#allocation5 + $0x10] sm:$0xf]
        %v279 = vld [vmem:[#allocation5 + $0x14] sm:$0xf]
        %v280 = vld [vmem:[#allocation5 + $0x18] sm:$0xf]
        %v281 = vld [vmem:[#allocation5 + $0x1c] sm:$0xf]
        %v282 = vld [vmem:[#allocation5 + $0x20] sm:$0xf]
        %v283 = vld [vmem:[#allocation5 + $0x24] sm:$0xf]
        %v284 = vld [vmem:[#allocation5 + $0x28] sm:$0xf]
        %v285 = vld [vmem:[#allocation5 + $0x2c] sm:$0xf]
        %v286 = vld [vmem:[#allocation5 + $0x30] sm:$0xf]
        %v287 = vld [vmem:[#allocation5 + $0x34] sm:$0xf]
        %v288 = vld [vmem:[#allocation5 + $0x38] sm:$0xf]
        %v289 = vld [vmem:[#allocation5 + $0x3c] sm:$0xf]
        %v290 = vld [vmem:[%s2] sm:$0x1]
        %v292 = vperm.slane %v290, 0
        %v358 = vunpack.c.l.b16 %v210
        %v359 = vunpack.c.l.b16 %v211
        %v360 = vunpack.c.l.b16 %v212
        %v361 = vunpack.c.l.b16 %v213
        %v362 = vunpack.c.l.b16 %v214
        %v363 = vunpack.c.l.b16 %v215
        %v364 = vunpack.c.l.b16 %v216
        %v365 = vunpack.c.l.b16 %v217
        %v366 = vunpack.c.l.b16 %v218
        %v367 = vunpack.c.l.b16 %v219
        %v368 = vunpack.c.l.b16 %v220
        %v369 = vunpack.c.l.b16 %v221
        %v370 = vunpack.c.l.b16 %v222
        %v371 = vunpack.c.l.b16 %v223
        %v372 = vunpack.c.l.b16 %v224
        %v373 = vunpack.c.l.b16 %v225
        %v374 = vunpack.c.l.b16 %v226
        %v375 = vunpack.c.l.b16 %v227
        %v376 = vunpack.c.l.b16 %v228
        %v377 = vunpack.c.l.b16 %v229
        %v378 = vunpack.c.l.b16 %v230
        %v379 = vunpack.c.l.b16 %v231
        %v380 = vunpack.c.l.b16 %v232
        %v381 = vunpack.c.l.b16 %v233
        %v382 = vunpack.c.l.b16 %v234
        %v383 = vunpack.c.l.b16 %v235
        %v384 = vunpack.c.l.b16 %v236
        %v385 = vunpack.c.l.b16 %v237
        %v386 = vunpack.c.l.b16 %v238
        %v387 = vunpack.c.l.b16 %v239
        %v388 = vunpack.c.l.b16 %v240
        %v389 = vunpack.c.l.b16 %v241
        %v390 = vunpack.c.l.b16 %v242
        %v391 = vunpack.c.l.b16 %v243
        %v392 = vunpack.c.l.b16 %v244
        %v393 = vunpack.c.l.b16 %v245
        %v394 = vunpack.c.l.b16 %v246
        %v395 = vunpack.c.l.b16 %v247
        %v396 = vunpack.c.l.b16 %v248
        %v397 = vunpack.c.l.b16 %v249
        %v398 = vunpack.c.l.b16 %v250
        %v399 = vunpack.c.l.b16 %v251
        %v400 = vunpack.c.l.b16 %v252
        %v401 = vunpack.c.l.b16 %v253
        %v402 = vunpack.c.l.b16 %v254
        %v403 = vunpack.c.l.b16 %v255
        %v404 = vunpack.c.l.b16 %v256
        %v405 = vunpack.c.l.b16 %v257
        %v406 = vunpack.c.l.b16 %v258
        %v407 = vunpack.c.l.b16 %v259
        %v408 = vunpack.c.l.b16 %v260
        %v409 = vunpack.c.l.b16 %v261
        %v410 = vunpack.c.l.b16 %v262
        %v411 = vunpack.c.l.b16 %v263
        %v412 = vunpack.c.l.b16 %v264
        %v413 = vunpack.c.l.b16 %v265
        %v414 = vunpack.c.l.b16 %v266
        %v415 = vunpack.c.l.b16 %v267
        %v416 = vunpack.c.l.b16 %v268
        %v417 = vunpack.c.l.b16 %v269
        %v418 = vunpack.c.l.b16 %v270
        %v419 = vunpack.c.l.b16 %v271
        %v420 = vunpack.c.l.b16 %v272
        %v421 = vunpack.c.l.b16 %v273
        %v422 = vpack.c.b16 %v359, %v358
        %v423 = vpack.c.b16 %v361, %v360
        %v424 = vpack.c.b16 %v363, %v362
        %v425 = vpack.c.b16 %v365, %v364
        %v426 = vpack.c.b16 %v367, %v366
        %v427 = vpack.c.b16 %v369, %v368
        %v428 = vpack.c.b16 %v371, %v370
        %v429 = vpack.c.b16 %v373, %v372
        %v430 = vpack.c.b16 %v375, %v374
        %v431 = vpack.c.b16 %v377, %v376
        %v432 = vpack.c.b16 %v379, %v378
        %v433 = vpack.c.b16 %v381, %v380
        %v434 = vpack.c.b16 %v383, %v382
        %v435 = vpack.c.b16 %v385, %v384
        %v436 = vpack.c.b16 %v387, %v386
        %v437 = vpack.c.b16 %v389, %v388
        %v438 = vpack.c.b16 %v391, %v390
        %v439 = vpack.c.b16 %v393, %v392
        %v440 = vpack.c.b16 %v395, %v394
        %v441 = vpack.c.b16 %v397, %v396
        %v442 = vpack.c.b16 %v399, %v398
        %v443 = vpack.c.b16 %v401, %v400
        %v444 = vpack.c.b16 %v403, %v402
        %v445 = vpack.c.b16 %v405, %v404
        %v446 = vpack.c.b16 %v407, %v406
        %v447 = vpack.c.b16 %v409, %v408
        %v448 = vpack.c.b16 %v411, %v410
        %v449 = vpack.c.b16 %v413, %v412
        %v450 = vpack.c.b16 %v415, %v414
        %v451 = vpack.c.b16 %v417, %v416
        %v452 = vpack.c.b16 %v419, %v418
        %v453 = vpack.c.b16 %v421, %v420
        %v502 = vunpack.c.l.b16 %v274
        %v503 = vunpack.c.l.b16 %v275
        %v504 = vunpack.c.l.b16 %v276
        %v505 = vunpack.c.l.b16 %v277
        %v506 = vunpack.c.l.b16 %v278
        %v507 = vunpack.c.l.b16 %v279
        %v508 = vunpack.c.l.b16 %v280
        %v509 = vunpack.c.l.b16 %v281
        %v510 = vunpack.c.l.b16 %v282
        %v511 = vunpack.c.l.b16 %v283
        %v512 = vunpack.c.l.b16 %v284
        %v513 = vunpack.c.l.b16 %v285
        %v514 = vunpack.c.l.b16 %v286
        %v515 = vunpack.c.l.b16 %v287
        %v516 = vunpack.c.l.b16 %v288
        %v517 = vunpack.c.l.b16 %v289
        %v518 = vpack.c.b16 %v503, %v502
        %v519 = vpack.c.b16 %v505, %v504
        %v520 = vpack.c.b16 %v507, %v506
        %v521 = vpack.c.b16 %v509, %v508
        %v522 = vpack.c.b16 %v511, %v510
        %v523 = vpack.c.b16 %v513, %v512
        %v524 = vpack.c.b16 %v515, %v514
        %v525 = vpack.c.b16 %v517, %v516
        %534 = vmatpush.bf16.msra.mxu0 %v525
        %535 = vmatpush.bf16.msra.mxu0 %v524
        %536 = vmatpush.bf16.msra.mxu0 %v523
        %537 = vmatpush.bf16.msra.mxu0 %v522
        %538 = vmatpush.bf16.msra.mxu0 %v521
        %539 = vmatpush.bf16.msra.mxu0 %v520
        %540 = vmatpush.bf16.msra.mxu0 %v519
        %541 = vmatpush.bf16.msra.mxu0 %v518
        %542 = vmatmul.bf16.gmra.mxu0 %v422
        %v543 = vpop.f32.mrf.mxu0
        %v544 = vadd.f32 %v292, %v543
        %v545 = vpop.f32.mrf.mxu0
        %v546 = vadd.f32 %v292, %v545
        %547 = vmatmul.bf16.gmra.mxu0 %v423
        %v548 = vpop.f32.mrf.mxu0
        %v549 = vadd.f32 %v292, %v548
        %v550 = vpop.f32.mrf.mxu0
        %v551 = vadd.f32 %v292, %v550
        %552 = vmatmul.bf16.gmra.mxu0 %v424
        %v553 = vpop.f32.mrf.mxu0
        %v554 = vadd.f32 %v292, %v553
        %v555 = vpop.f32.mrf.mxu0
        %v556 = vadd.f32 %v292, %v555
        %557 = vmatmul.bf16.gmra.mxu0 %v425
        %v558 = vpop.f32.mrf.mxu0
        %v559 = vadd.f32 %v292, %v558
        %v560 = vpop.f32.mrf.mxu0
        %v561 = vadd.f32 %v292, %v560
        %562 = vmatmul.bf16.gmra.mxu0 %v426
        %v563 = vpop.f32.mrf.mxu0
        %v564 = vadd.f32 %v292, %v563
        %v565 = vpop.f32.mrf.mxu0
        %v566 = vadd.f32 %v292, %v565
        %567 = vmatmul.bf16.gmra.mxu0 %v427
        %v568 = vpop.f32.mrf.mxu0
        %v569 = vadd.f32 %v292, %v568
        %v570 = vpop.f32.mrf.mxu0
        %v571 = vadd.f32 %v292, %v570
        %572 = vmatmul.bf16.gmra.mxu0 %v428
        %v573 = vpop.f32.mrf.mxu0
        %v574 = vadd.f32 %v292, %v573
        %v575 = vpop.f32.mrf.mxu0
        %v576 = vadd.f32 %v292, %v575
        %577 = vmatmul.bf16.gmra.mxu0 %v429
        %v578 = vpop.f32.mrf.mxu0
        %v579 = vadd.f32 %v292, %v578
        %v580 = vpop.f32.mrf.mxu0
        %v581 = vadd.f32 %v292, %v580
        %582 = vmatmul.bf16.gmra.mxu0 %v430
        %v583 = vpop.f32.mrf.mxu0
        %v584 = vadd.f32 %v292, %v583
        %v585 = vpop.f32.mrf.mxu0
        %v586 = vadd.f32 %v292, %v585
        %587 = vmatmul.bf16.gmra.mxu0 %v431
        %v588 = vpop.f32.mrf.mxu0
        %v589 = vadd.f32 %v292, %v588
        %v590 = vpop.f32.mrf.mxu0
        %v591 = vadd.f32 %v292, %v590
        %592 = vmatmul.bf16.gmra.mxu0 %v432
        %v593 = vpop.f32.mrf.mxu0
        %v594 = vadd.f32 %v292, %v593
        %v595 = vpop.f32.mrf.mxu0
        %v596 = vadd.f32 %v292, %v595
        %597 = vmatmul.bf16.gmra.mxu0 %v433
        %v598 = vpop.f32.mrf.mxu0
        %v599 = vadd.f32 %v292, %v598
        %v600 = vpop.f32.mrf.mxu0
        %v601 = vadd.f32 %v292, %v600
        %602 = vmatmul.bf16.gmra.mxu0 %v434
        %v603 = vpop.f32.mrf.mxu0
        %v604 = vadd.f32 %v292, %v603
        %v605 = vpop.f32.mrf.mxu0
        %v606 = vadd.f32 %v292, %v605
        %607 = vmatmul.bf16.gmra.mxu0 %v435
        %v608 = vpop.f32.mrf.mxu0
        %v609 = vadd.f32 %v292, %v608
        %v610 = vpop.f32.mrf.mxu0
        %v611 = vadd.f32 %v292, %v610
        %612 = vmatmul.bf16.gmra.mxu0 %v436
        %v613 = vpop.f32.mrf.mxu0
        %v614 = vadd.f32 %v292, %v613
        %v615 = vpop.f32.mrf.mxu0
        %v616 = vadd.f32 %v292, %v615
        %617 = vmatmul.bf16.gmra.mxu0 %v437
        %v618 = vpop.f32.mrf.mxu0
        %v619 = vadd.f32 %v292, %v618
        %v620 = vpop.f32.mrf.mxu0
        %v621 = vadd.f32 %v292, %v620
        %622 = vmatmul.bf16.gmra.mxu0 %v438
        %v623 = vpop.f32.mrf.mxu0
        %v624 = vadd.f32 %v292, %v623
        %v625 = vpop.f32.mrf.mxu0
        %v626 = vadd.f32 %v292, %v625
        %627 = vmatmul.bf16.gmra.mxu0 %v439
        %v628 = vpop.f32.mrf.mxu0
        %v629 = vadd.f32 %v292, %v628
        %v630 = vpop.f32.mrf.mxu0
        %v631 = vadd.f32 %v292, %v630
        %632 = vmatmul.bf16.gmra.mxu0 %v440
        %v633 = vpop.f32.mrf.mxu0
        %v634 = vadd.f32 %v292, %v633
        %v635 = vpop.f32.mrf.mxu0
        %v636 = vadd.f32 %v292, %v635
        %637 = vmatmul.bf16.gmra.mxu0 %v441
        %v638 = vpop.f32.mrf.mxu0
        %v639 = vadd.f32 %v292, %v638
        %v640 = vpop.f32.mrf.mxu0
        %v641 = vadd.f32 %v292, %v640
        %642 = vmatmul.bf16.gmra.mxu0 %v442
        %v643 = vpop.f32.mrf.mxu0
        %v644 = vadd.f32 %v292, %v643
        %v645 = vpop.f32.mrf.mxu0
        %v646 = vadd.f32 %v292, %v645
        %647 = vmatmul.bf16.gmra.mxu0 %v443
        %v648 = vpop.f32.mrf.mxu0
        %v649 = vadd.f32 %v292, %v648
        %v650 = vpop.f32.mrf.mxu0
        %v651 = vadd.f32 %v292, %v650
        %652 = vmatmul.bf16.gmra.mxu0 %v444
        %v653 = vpop.f32.mrf.mxu0
        %v654 = vadd.f32 %v292, %v653
        %v655 = vpop.f32.mrf.mxu0
        %v656 = vadd.f32 %v292, %v655
        %657 = vmatmul.bf16.gmra.mxu0 %v445
        %v658 = vpop.f32.mrf.mxu0
        %v659 = vadd.f32 %v292, %v658
        %v660 = vpop.f32.mrf.mxu0
        %v661 = vadd.f32 %v292, %v660
        %662 = vmatmul.bf16.gmra.mxu0 %v446
        %v663 = vpop.f32.mrf.mxu0
        %v664 = vadd.f32 %v292, %v663
        %v665 = vpop.f32.mrf.mxu0
        %v666 = vadd.f32 %v292, %v665
        %667 = vmatmul.bf16.gmra.mxu0 %v447
        %v668 = vpop.f32.mrf.mxu0
        %v669 = vadd.f32 %v292, %v668
        %v670 = vpop.f32.mrf.mxu0
        %v671 = vadd.f32 %v292, %v670
        %672 = vmatmul.bf16.gmra.mxu0 %v448
        %v673 = vpop.f32.mrf.mxu0
        %v674 = vadd.f32 %v292, %v673
        %v675 = vpop.f32.mrf.mxu0
        %v676 = vadd.f32 %v292, %v675
        %677 = vmatmul.bf16.gmra.mxu0 %v449
        %v678 = vpop.f32.mrf.mxu0
        %v679 = vadd.f32 %v292, %v678
        %v680 = vpop.f32.mrf.mxu0
        %v681 = vadd.f32 %v292, %v680
        %682 = vmatmul.bf16.gmra.mxu0 %v450
        %v683 = vpop.f32.mrf.mxu0
        %v684 = vadd.f32 %v292, %v683
        %v685 = vpop.f32.mrf.mxu0
        %v686 = vadd.f32 %v292, %v685
        %687 = vmatmul.bf16.gmra.mxu0 %v451
        %v688 = vpop.f32.mrf.mxu0
        %v689 = vadd.f32 %v292, %v688
        %v690 = vpop.f32.mrf.mxu0
        %v691 = vadd.f32 %v292, %v690
        %692 = vmatmul.bf16.gmra.mxu0 %v452
        %v693 = vpop.f32.mrf.mxu0
        %v694 = vadd.f32 %v292, %v693
        %v695 = vpop.f32.mrf.mxu0
        %v696 = vadd.f32 %v292, %v695
        %697 = vmatmul.bf16.gmra.mxu0 %v453
        %v698 = vpop.f32.mrf.mxu0
        %v699 = vadd.f32 %v292, %v698
        %v700 = vpop.f32.mrf.mxu0
        %v701 = vadd.f32 %v292, %v700
        %702 = vdwg.mxu0
        %v703 = vmax.f32 %v544, 0.0
        %v704 = vmax.f32 %v546, 0.0
        %v705 = vmax.f32 %v549, 0.0
        %v706 = vmax.f32 %v551, 0.0
        %v707 = vmax.f32 %v554, 0.0
        %v708 = vmax.f32 %v556, 0.0
        %v709 = vmax.f32 %v559, 0.0
        %v710 = vmax.f32 %v561, 0.0
        %v711 = vmax.f32 %v564, 0.0
        %v712 = vmax.f32 %v566, 0.0
        %v713 = vmax.f32 %v569, 0.0
        %v714 = vmax.f32 %v571, 0.0
        %v715 = vmax.f32 %v574, 0.0
        %v716 = vmax.f32 %v576, 0.0
        %v717 = vmax.f32 %v579, 0.0
        %v718 = vmax.f32 %v581, 0.0
        %v719 = vmax.f32 %v584, 0.0
        %v720 = vmax.f32 %v586, 0.0
        %v721 = vmax.f32 %v589, 0.0
        %v722 = vmax.f32 %v591, 0.0
        %v723 = vmax.f32 %v594, 0.0
        %v724 = vmax.f32 %v596, 0.0
        %v725 = vmax.f32 %v599, 0.0
        %v726 = vmax.f32 %v601, 0.0
        %v727 = vmax.f32 %v604, 0.0
        %v728 = vmax.f32 %v606, 0.0
        %v729 = vmax.f32 %v609, 0.0
        %v730 = vmax.f32 %v611, 0.0
        %v731 = vmax.f32 %v614, 0.0
        %v732 = vmax.f32 %v616, 0.0
        %v733 = vmax.f32 %v619, 0.0
        %v734 = vmax.f32 %v621, 0.0
        %v735 = vmax.f32 %v624, 0.0
        %v736 = vmax.f32 %v626, 0.0
        %v737 = vmax.f32 %v629, 0.0
        %v738 = vmax.f32 %v631, 0.0
        %v739 = vmax.f32 %v634, 0.0
        %v740 = vmax.f32 %v636, 0.0
        %v741 = vmax.f32 %v639, 0.0
        %v742 = vmax.f32 %v641, 0.0
        %v743 = vmax.f32 %v644, 0.0
        %v744 = vmax.f32 %v646, 0.0
        %v745 = vmax.f32 %v649, 0.0
        %v746 = vmax.f32 %v651, 0.0
        %v747 = vmax.f32 %v654, 0.0
        %v748 = vmax.f32 %v656, 0.0
        %v749 = vmax.f32 %v659, 0.0
        %v750 = vmax.f32 %v661, 0.0
        %v751 = vmax.f32 %v664, 0.0
        %v752 = vmax.f32 %v666, 0.0
        %v753 = vmax.f32 %v669, 0.0
        %v754 = vmax.f32 %v671, 0.0
        %v755 = vmax.f32 %v674, 0.0
        %v756 = vmax.f32 %v676, 0.0
        %v757 = vmax.f32 %v679, 0.0
        %v758 = vmax.f32 %v681, 0.0
        %v759 = vmax.f32 %v684, 0.0
        %v760 = vmax.f32 %v686, 0.0
        %v761 = vmax.f32 %v689, 0.0
        %v762 = vmax.f32 %v691, 0.0
        %v763 = vmax.f32 %v694, 0.0
        %v764 = vmax.f32 %v696, 0.0
        %v765 = vmax.f32 %v699, 0.0
        %v766 = vmax.f32 %v701, 0.0
        %767 = vst [vmem:[%s207] sm:$0xff] %v703
        %768 = vst [vmem:[%s207 + $0x8] sm:$0xff] %v704
        %769 = vst [vmem:[%s207 + $0x10] sm:$0xff] %v705
        %770 = vst [vmem:[%s207 + $0x18] sm:$0xff] %v706
        %771 = vst [vmem:[%s207 + $0x20] sm:$0xff] %v707
        %772 = vst [vmem:[%s207 + $0x28] sm:$0xff] %v708
        %773 = vst [vmem:[%s207 + $0x30] sm:$0xff] %v709
        %774 = vst [vmem:[%s207 + $0x38] sm:$0xff] %v710
        %775 = vst [vmem:[%s207 + $0x40] sm:$0xff] %v711
        %776 = vst [vmem:[%s207 + $0x48] sm:$0xff] %v712
        %777 = vst [vmem:[%s207 + $0x50] sm:$0xff] %v713
        %778 = vst [vmem:[%s207 + $0x58] sm:$0xff] %v714
        %779 = vst [vmem:[%s207 + $0x60] sm:$0xff] %v715
        %780 = vst [vmem:[%s207 + $0x68] sm:$0xff] %v716
        %781 = vst [vmem:[%s207 + $0x70] sm:$0xff] %v717
        %782 = vst [vmem:[%s207 + $0x78] sm:$0xff] %v718
        %783 = vst [vmem:[%s207 + $0x80] sm:$0xff] %v719
        %784 = vst [vmem:[%s207 + $0x88] sm:$0xff] %v720
        %785 = vst [vmem:[%s207 + $0x90] sm:$0xff] %v721
        %786 = vst [vmem:[%s207 + $0x98] sm:$0xff] %v722
        %787 = vst [vmem:[%s207 + $0xa0] sm:$0xff] %v723
        %788 = vst [vmem:[%s207 + $0xa8] sm:$0xff] %v724
        %789 = vst [vmem:[%s207 + $0xb0] sm:$0xff] %v725
        %790 = vst [vmem:[%s207 + $0xb8] sm:$0xff] %v726
        %791 = vst [vmem:[%s207 + $0xc0] sm:$0xff] %v727
        %792 = vst [vmem:[%s207 + $0xc8] sm:$0xff] %v728
        %793 = vst [vmem:[%s207 + $0xd0] sm:$0xff] %v729
        %794 = vst [vmem:[%s207 + $0xd8] sm:$0xff] %v730
        %795 = vst [vmem:[%s207 + $0xe0] sm:$0xff] %v731
        %796 = vst [vmem:[%s207 + $0xe8] sm:$0xff] %v732
        %797 = vst [vmem:[%s207 + $0xf0] sm:$0xff] %v733
        %798 = vst [vmem:[%s207 + $0xf8] sm:$0xff] %v734
        %799 = vst [vmem:[%s207 + $0x100] sm:$0xff] %v735
        %800 = vst [vmem:[%s207 + $0x108] sm:$0xff] %v736
        %801 = vst [vmem:[%s207 + $0x110] sm:$0xff] %v737
        %802 = vst [vmem:[%s207 + $0x118] sm:$0xff] %v738
        %803 = vst [vmem:[%s207 + $0x120] sm:$0xff] %v739
        %804 = vst [vmem:[%s207 + $0x128] sm:$0xff] %v740
        %805 = vst [vmem:[%s207 + $0x130] sm:$0xff] %v741
        %806 = vst [vmem:[%s207 + $0x138] sm:$0xff] %v742
        %807 = vst [vmem:[%s207 + $0x140] sm:$0xff] %v743
        %808 = vst [vmem:[%s207 + $0x148] sm:$0xff] %v744
        %809 = vst [vmem:[%s207 + $0x150] sm:$0xff] %v745
        %810 = vst [vmem:[%s207 + $0x158] sm:$0xff] %v746
        %811 = vst [vmem:[%s207 + $0x160] sm:$0xff] %v747
        %812 = vst [vmem:[%s207 + $0x168] sm:$0xff] %v748
        %813 = vst [vmem:[%s207 + $0x170] sm:$0xff] %v749
        %814 = vst [vmem:[%s207 + $0x178] sm:$0xff] %v750
        %815 = vst [vmem:[%s207 + $0x180] sm:$0xff] %v751
        %816 = vst [vmem:[%s207 + $0x188] sm:$0xff] %v752
        %817 = vst [vmem:[%s207 + $0x190] sm:$0xff] %v753
        %818 = vst [vmem:[%s207 + $0x198] sm:$0xff] %v754
        %819 = vst [vmem:[%s207 + $0x1a0] sm:$0xff] %v755
        %820 = vst [vmem:[%s207 + $0x1a8] sm:$0xff] %v756
        %821 = vst [vmem:[%s207 + $0x1b0] sm:$0xff] %v757
        %822 = vst [vmem:[%s207 + $0x1b8] sm:$0xff] %v758
        %823 = vst [vmem:[%s207 + $0x1c0] sm:$0xff] %v759
        %824 = vst [vmem:[%s207 + $0x1c8] sm:$0xff] %v760
        %825 = vst [vmem:[%s207 + $0x1d0] sm:$0xff] %v761
        %826 = vst [vmem:[%s207 + $0x1d8] sm:$0xff] %v762
        %827 = vst [vmem:[%s207 + $0x1e0] sm:$0xff] %v763
        %828 = vst [vmem:[%s207 + $0x1e8] sm:$0xff] %v764
        %829 = vst [vmem:[%s207 + $0x1f0] sm:$0xff] %v765
        %830 = vst [vmem:[%s207 + $0x1f8] sm:$0xff] %v766
        %s831 = sand.u32 %s97, 1
        %s832 = scalar_lea.sflag [#allocation4], %s831
        %s833 = sand.u32 %s97, 1
        %s834 = smul.addr %s833, 512
        %s835 = scalar_lea.vmem [#allocation7], %s834
        // Predicated region
        $region41: #{tpu_custom_call.1} parent=31 // pred_check
          %p836 = pneg %p107
        $region42: #{tpu_custom_call.1} parent=31 // pred_check_branch
          %838 = sbr.rel (%p836) target = $region44
        $region43: #{tpu_custom_call.1} parent=31 // pred_region
          %s839 = smul.u32 64, %s21
          %841 = vsyncadd %s832, 0
          %s842 = smul.addr %s839, 8
          %s843 = scalar_lea.hbm %s3, %s842
          %s844 = sshll.u32 %s835, 4
          %s845 = int_to_ptr.vmem [resolvable:$true] %s844
          %s846 = sshll.u32 %s843, 4
          %s847 = int_to_ptr.hbm [resolvable:$true] %s846
          %852 = dma.vmem_to_hbm [thread:$0]  %s845, 8192, %s847, %s832, 128, 128, 8
        $region44: #{tpu_custom_call.1} parent=31 // pred_fallthru
          _
      $region32: #{tpu_custom_call.1} parent=5 // pred_fallthru
        _
      %p853 = scmp.le.s32.totalorder 2, %s16
      // Predicated region
      $region45: #{tpu_custom_call.1} parent=5 // pred_check
        %p854 = pneg %p853
      $region46: #{tpu_custom_call.1} parent=5 // pred_check_branch
        %856 = sbr.rel (%p854) target = $region48
      $region47: #{tpu_custom_call.1} parent=5 // pred_region
        %s857 = ssub.s32 %s16, 2
        // Predicated region
        $region49: #{tpu_custom_call.1} parent=47 // pred_check
          %p858 = pneg %p113
        $region50: #{tpu_custom_call.1} parent=47 // pred_check_branch
          %860 = sbr.rel (%p858) target = $region52
        $region51: #{tpu_custom_call.1} parent=47 // pred_region
          %s861 = sand.u32 %s98, 1
          %s862 = scalar_lea.sflag [#allocation4], %s861
          %s863 = sand.u32 %s98, 1
          %s864 = smul.addr %s863, 512
          %s865 = scalar_lea.vmem [#allocation7], %s864
          %867 = dma.done %s862, 8192
        $region52: #{tpu_custom_call.1} parent=47 // pred_fallthru
          _
      $region48: #{tpu_custom_call.1} parent=5 // pred_fallthru
        _
    $region6: #{tpu_custom_call.1} parent=1 // loop_footer
      %s20 = sadd.s32 1, %s16
    $region7: #{tpu_custom_call.1} parent=1 // loop_footer_branch
      %15 = sbr.rel target = $region3
    $region8: #{tpu_custom_call.1} parent=1 // loop_exit
      _
    %868 = vsyncpa [#allocation3], 1
    %s869 = scalar_lea.sflag [#allocation3], 1
    %870 = vsyncpa %s869, 1
    %871 = vsyncpa [#allocation6], 1
    %872 = vsyncpa [#allocation4], 1
    %s873 = scalar_lea.sflag [#allocation4], 1
    %874 = vsyncpa %s873, 1

</llo_original>
